<compile_context>
chip_gen: v7x
topology: tpu7x:2x2x1
jax: 0.10.0
libtpu: 0.0.40
codegen_flags: <defaults>
</compile_context>

<pallas_src>
import functools

import jax
import jax.numpy as jnp
from jax.experimental import pallas as pl
from jax.experimental.pallas import tpu as pltpu

EPS = 1e-5
COMPUTE_DTYPE = jnp.bfloat16   # MXU operand dtype; accumulation stays fp32
ATTN_DTYPE = jnp.bfloat16      # dtype of the returned attention weights (float32 for parity)


# ----------------------------------------------------------------------------- helpers
def _round_up(x, m):
    return (x + m - 1) // m * m


def _seq_tile(T):
    t = min(T, 128)
    assert T % t == 0, f"sequence length {T} must be a multiple of the tile {t}"
    return t


def _layernorm(x, g, b):
    mu = jnp.mean(x, axis=-1, keepdims=True)
    var = jnp.mean((x - mu) ** 2, axis=-1, keepdims=True)
    return (x - mu) * jax.lax.rsqrt(var + EPS) * g + b


def _swish(x):
    return x * jax.nn.sigmoid(x)


@functools.lru_cache(maxsize=None)
def _vmem_limit_bytes():
    try:
        cap = pltpu.get_tpu_info().vmem_capacity_bytes
        return int(cap * 0.9)
    except Exception:
        return None


def _params(dims):
    return pltpu.CompilerParams(dimension_semantics=dims,
                                vmem_limit_bytes=_vmem_limit_bytes())


@functools.lru_cache(maxsize=None)
def _single_buffer_ok():
    """Probe whether pipeline_mode=pl.Buffered(1) (single-buffered invariant operands) works."""
    try:
        def kern(x_ref, w_ref, o_ref):
            o_ref[...] = x_ref[...] + w_ref[...]

        x = jnp.arange(16 * 128, dtype=jnp.float32).reshape(16, 128)
        w = jnp.ones((8, 128), jnp.float32)
        out = pl.pallas_call(
            kern, grid=(2,),
            in_specs=[pl.BlockSpec((8, 128), lambda i: (i, 0)),
                      pl.BlockSpec((8, 128), lambda i: (0, 0), pipeline_mode=pl.Buffered(1))],
            out_specs=pl.BlockSpec((8, 128), lambda i: (i, 0)),
            out_shape=jax.ShapeDtypeStruct((16, 128), jnp.float32),
        )(x, w)
        return bool(jnp.allclose(out, x + 1.0))
    except Exception:
        return False


def _const_spec(a):
    """Full-array grid-invariant operand; single-buffered when supported."""
    nd = a.ndim
    idx = lambda *_, _z=(0,) * nd: _z
    if _single_buffer_ok():
        return pl.BlockSpec(a.shape, idx, pipeline_mode=pl.Buffered(1))
    return pl.BlockSpec(a.shape, idx)


# ----------------------------------------------------------------------------- relative shift
def _rel_skew(aw, T, tq, mode):
    """out[i, j] = aw[i, (tq - i) + j]  (Transformer-XL relative shift, padded-window form)."""
    wpad = aw.shape[-1]
    if mode == "A":      # pltpu.roll follows jnp.roll: out[j] = in[(j - s) % n], s_i = shift + i*stride
        return pltpu.roll(aw, wpad - tq, 1, stride=1, stride_axis=0)[:, :T]
    if mode == "B":      # opposite convention: out[j] = in[(j + s) % n]
        return pltpu.roll(aw, tq, 1, stride=-1, stride_axis=0)[:, :T]
    # fallback: static per-row slices (always correct, slower)
    rows = [aw[i:i + 1, tq - i:tq - i + T] for i in range(tq)]
    return rows[0] if len(rows) == 1 else jnp.concatenate(rows, axis=0)


@functools.lru_cache(maxsize=None)
def _rel_shift_mode():
    """Detect the sign convention of the strided pltpu.roll with a tiny probe kernel."""
    tq0, t0, w0 = 8, 8, 128
    aw = jnp.arange(tq0 * w0, dtype=jnp.float32).reshape(tq0, w0)
    want = jnp.stack([aw[i, tq0 - i:tq0 - i + t0] for i in range(tq0)], axis=0)
    for mode in ("A", "B"):
        try:
            def kern(x_ref, o_ref, _m=mode):
                o_ref[...] = _rel_skew(x_ref[...], t0, tq0, _m)

            got = pl.pallas_call(
                kern, out_shape=jax.ShapeDtypeStruct((tq0, t0), jnp.float32))(aw)
            if bool(jnp.allclose(got, want)):
                return mode
        except Exception:
            continue
    return "loop"


# ----------------------------------------------------------------------------- kernels
def _ff_kernel(x_ref, g_ref, b_ref, w1_ref, b1_ref, w2_ref, b2_ref, lg_ref, lb_ref,
               o_ref, *, pre_ln, final_ln):
    x = x_ref[0]                                                    # (ts, D) fp32
    if pre_ln:                                                      # prenorm block LN fused here
        x = _layernorm(x, lg_ref[...], lb_ref[...])
    h = _layernorm(x, g_ref[...], b_ref[...]).astype(COMPUTE_DTYPE)
    h = jnp.dot(h, w1_ref[...], preferred_element_type=jnp.float32) + b1_ref[...]
    h = _swish(h).astype(COMPUTE_DTYPE)
    h = jnp.dot(h, w2_ref[...], preferred_element_type=jnp.float32) + b2_ref[...]
    y = x + 0.5 * h
    if final_ln:                                                    # postnorm final LN fused here
        y = _layernorm(y, lg_ref[...], lb_ref[...])
    o_ref[0] = y


def _qkv_kernel(x_ref, g_ref, b_ref, w_ref, bqkv_ref, q_ref, k_ref, v_ref):
    D = x_ref.shape[-1]
    h = _layernorm(x_ref[0], g_ref[...], b_ref[...]).astype(COMPUTE_DTYPE)
    z = jnp.dot(h, w_ref[...], preferred_element_type=jnp.float32) + bqkv_ref[...]
    q_ref[0] = z[:, :D].astype(q_ref.dtype)
    k_ref[0] = z[:, D:2 * D].astype(k_ref.dtype)
    v_ref[0] = z[:, 2 * D:].astype(v_ref.dtype)


def _attn_kernel(x_ref, q_ref, k_ref, v_ref, m_ref, u_ref, vb_ref, pos_ref, wo_ref, bo_ref,
                 o_ref, attn_ref, *, n_heads, tq, wpad, roll_mode):
    D = q_ref.shape[-1]
    T = k_ref.shape[1]
    dh = D // n_heads
    scale = 1.0 / (float(dh) ** 0.5)

    x = x_ref[0]                                                    # (tq, D) fp32 residual
    q = q_ref[0].astype(jnp.float32)                                # (tq, D)
    neg = (1.0 - m_ref[0]) * (-1e9)                                 # (1, T) key-padding mask

    s = T - (pl.program_id(1) + 1) * tq                             # positional-window start (>= 0)
    if tq % 128 == 0:
        s = pl.multiple_of(s, 128)

    y = jnp.zeros((tq, D), jnp.float32)
    for h in range(n_heads):
        sl = slice(h * dh, (h + 1) * dh)
        qh = q[:, sl]                                               # (tq, dh)
        kh = k_ref[0, :, sl]                                        # (T, dh) bf16
        vh = v_ref[0, :, sl]                                        # (T, dh) bf16
        qu = (qh + u_ref[h:h + 1, :]).astype(COMPUTE_DTYPE)         # content bias
        qp = (qh + vb_ref[h:h + 1, :]).astype(COMPUTE_DTYPE)        # positional bias

        content = jnp.einsum('td,sd->ts', qu, kh,
                             preferred_element_type=jnp.float32)    # (tq, T)
        pw = pos_ref[h, :, pl.ds(s, wpad)]                          # (dh, wpad) window
        aw = jnp.dot(qp, pw, preferred_element_type=jnp.float32)    # (tq, wpad)
        pos = _rel_skew(aw, T, tq, roll_mode)                       # (tq, T)

        scores = (content + pos) * scale + neg
        scores = scores - jnp.max(scores, axis=-1, keepdims=True)
        e = jnp.exp(scores)
        attn = e * pl.reciprocal(jnp.sum(e, axis=-1, keepdims=True), approx=True)
        attn_ref[0, h] = attn.astype(attn_ref.dtype)

        ctx = jnp.dot(attn.astype(COMPUTE_DTYPE), vh, preferred_element_type=jnp.float32)
        y = y + jnp.dot(ctx.astype(COMPUTE_DTYPE), wo_ref[sl, :],
                        preferred_element_type=jnp.float32)
    o_ref[0] = x + y + bo_ref[...]


def _conv_kernel(x_ref, halo_ref, g_ref, b_ref, w1_ref, b1_ref, wdw_ref, bdw_ref,
                 bng_ref, bnb_ref, bnm_ref, bnv_ref, w2_ref, b2_ref, o_ref, *, pad, ksz):
    x = x_ref[0]                                                    # (tt, D)
    tt, D = x.shape

    if pad > 0:
        halo = halo_ref[0, 0]                                       # (2*pad, D) neighbouring rows
        xin = jnp.concatenate([halo[:pad], x, halo[pad:]], axis=0)  # (tt + 2*pad, D)
    else:
        xin = x

    h = _layernorm(xin, g_ref[...], b_ref[...]).astype(COMPUTE_DTYPE)
    z = jnp.dot(h, w1_ref[...], preferred_element_type=jnp.float32) + b1_ref[...]
    hg = z[:, :D] * jax.nn.sigmoid(z[:, D:])                        # GLU (fused (D, 2D) matmul)

    if pad > 0:
        # zero the conv input outside [0, T) ("same" zero padding semantics)
        t = pl.program_id(1)
        ridx = jax.lax.broadcasted_iota(jnp.int32, (tt + 2 * pad, 1), 0) + (t * tt - pad)
        total = tt * pl.num_programs(1)
        hg = hg * ((ridx >= 0) & (ridx < total)).astype(hg.dtype)

    wdw = wdw_ref[...]                                              # (ksz, D)
    acc = jnp.zeros((tt, D), jnp.float32)
    for i in range(ksz):
        acc = acc + hg[i:i + tt, :] * wdw[i:i + 1, :]
    acc = acc + bdw_ref[...]

    scale = bng_ref[...] * jax.lax.rsqrt(bnv_ref[...] + EPS)        # BatchNorm (running stats)
    hb = (acc - bnm_ref[...]) * scale + bnb_ref[...]
    hb = _swish(hb).astype(COMPUTE_DTYPE)
    y = jnp.dot(hb, w2_ref[...], preferred_element_type=jnp.float32) + b2_ref[...]
    o_ref[0] = x + y


# ----------------------------------------------------------------------------- wrappers (glue)
def feed_forward(x, p, ln_p, *, pre_ln=False, final_ln=False):
    B, T, D = x.shape
    ts = _seq_tile(T)
    cdt = COMPUTE_DTYPE
    args = (p["g"], p["b"], p["w1"].astype(cdt), p["b1"], p["w2"].astype(cdt), p["b2"],
            ln_p["g"], ln_p["b"])
    kernel = functools.partial(_ff_kernel, pre_ln=pre_ln, final_ln=final_ln)
    return pl.pallas_call(
        kernel,
        grid=(B, T // ts),
        in_specs=[pl.BlockSpec((1, ts, D), lambda b, t: (b, t, 0))]
                 + [_const_spec(a) for a in args],
        out_specs=pl.BlockSpec((1, ts, D), lambda b, t: (b, t, 0)),
        out_shape=jax.ShapeDtypeStruct((B, T, D), jnp.float32),
        compiler_params=_params(("parallel", "parallel")),
    )(x, *args)


def _qkv_projection(x, p):
    B, T, D = x.shape
    ts = _seq_tile(T)
    cdt = COMPUTE_DTYPE
    w_qkv = jnp.concatenate([p["wq"], p["wk"], p["wv"]], axis=1).astype(cdt)   # (D, 3D)
    b_qkv = jnp.concatenate([p["bq"], p["bk"], p["bv"]], axis=1)               # (1, 3D)
    args = (p["g"], p["b"], w_qkv, b_qkv)

    def seq_spec():
        return pl.BlockSpec((1, ts, D), lambda b, t: (b, t, 0))

    oshape = jax.ShapeDtypeStruct((B, T, D), cdt)
    return pl.pallas_call(
        _qkv_kernel,
        grid=(B, T // ts),
        in_specs=[seq_spec()] + [_const_spec(a) for a in args],
        out_specs=(seq_spec(), seq_spec(), seq_spec()),
        out_shape=(oshape, oshape, oshape),
        compiler_params=_params(("parallel", "parallel")),
    )(x, *args)


def rel_mhsa(x, mask, p, n_heads):
    B, T, D = x.shape
    assert D % n_heads == 0
    dh = D // n_heads
    L = p["pos_emb"].shape[0]
    tgt_len = (L + 1) // 2
    assert T <= tgt_len, "sequence length must not exceed tgt_len of the positional table"

    # smaller query tile at long sequence lengths keeps per-step VMEM bounded (v7x)
    tq = 64 if (T >= 1024 and T % 64 == 0) else _seq_tile(T)
    nq = T // tq
    wpad = _round_up(tq + T, 128)          # lane-padded positional-window width
    M = T - tq + wpad
    cdt = COMPUTE_DTYPE

    # Projected positional table, reversed so every query tile reads a contiguous window
    # [s, s + wpad) along the last axis:  p_rev[h, d, m] = P_proj[tgt_len-1+T-m, h, d].
    # Clipped indices are never read by valid (query, key) pairs.
    p_proj = (p["pos_emb"] @ p["wpos"]).reshape(L, n_heads, dh)
    m_idx = jnp.clip(tgt_len - 1 + T - jnp.arange(M), 0, L - 1)
    p_rev = jnp.transpose(p_proj[m_idx], (1, 2, 0)).astype(cdt)     # (H, dh, M) grid-invariant

    q, k, v = _qkv_projection(x, p)                                 # (B, T, D) bf16, mixed-head
    mask3 = mask.reshape(B, 1, T).astype(jnp.float32)
    wo = p["wo"].astype(cdt)
    roll_mode = _rel_shift_mode()

    kernel = functools.partial(_attn_kernel, n_heads=n_heads, tq=tq, wpad=wpad,
                               roll_mode=roll_mode)
    args = (x, q, k, v, mask3, p["u"], p["v"], p_rev, wo, p["bo"])
    in_specs = [
        pl.BlockSpec((1, tq, D), lambda b, t: (b, t, 0)),           # x (residual)
        pl.BlockSpec((1, tq, D), lambda b, t: (b, t, 0)),           # q tile
        pl.BlockSpec((1, T, D), lambda b, t: (b, 0, 0)),            # k (full keys; fetched per batch)
        pl.BlockSpec((1, T, D), lambda b, t: (b, 0, 0)),            # v
        pl.BlockSpec((1, 1, T), lambda b, t: (b, 0, 0)),            # key padding mask
        _const_spec(p["u"]), _const_spec(p["v"]), _const_spec(p_rev),
        _const_spec(wo), _const_spec(p["bo"]),
    ]
    out, attn = pl.pallas_call(
        kernel,
        grid=(B, nq),
        in_specs=in_specs,
        out_specs=(pl.BlockSpec((1, tq, D), lambda b, t: (b, t, 0)),
                   pl.BlockSpec((1, n_heads, tq, T), lambda b, t: (b, 0, t, 0))),
        out_shape=(jax.ShapeDtypeStruct((B, T, D), jnp.float32),
                   jax.ShapeDtypeStruct((B, n_heads, T, T), ATTN_DTYPE)),
        compiler_params=_params(("parallel", "parallel")),
    )(*args)
    return out, attn


def conv_module(x, p, kernel_size):
    B, T, D = x.shape
    assert kernel_size % 2 == 1, "depthwise conv assumes an odd kernel size"
    pad = (kernel_size - 1) // 2
    tt = _seq_tile(T)
    nt = T // tt
    assert pad <= tt, "halo must fit within one neighbouring tile"
    cdt = COMPUTE_DTYPE

    if pad > 0:
        xp = jnp.pad(x, ((0, 0), (pad, pad), (0, 0)))
        base = jnp.arange(nt) * tt
        li = base[:, None] + jnp.arange(pad)[None, :]               # rows just before each tile
        ri = (base + tt + pad)[:, None] + jnp.arange(pad)[None, :]  # rows just after each tile
        halo = jnp.concatenate([xp[:, li, :], xp[:, ri, :]], axis=2)    # (B, nt, 2*pad, D)
    else:
        halo = jnp.zeros((B, nt, 2, D), x.dtype)                    # dummy, unused

    args = (p["g"], p["b"], p["w_pw1"].astype(cdt), p["b_pw1"], p["w_dw"], p["b_dw"],
            p["bn_g"], p["bn_b"], p["bn_m"], p["bn_v"], p["w_pw2"].astype(cdt), p["b_pw2"])
    kernel = functools.partial(_conv_kernel, pad=pad, ksz=kernel_size)
    return pl.pallas_call(
        kernel,
        grid=(B, nt),
        in_specs=[pl.BlockSpec((1, tt, D), lambda b, t: (b, t, 0)),
                  pl.BlockSpec((1, 1, halo.shape[2], D), lambda b, t: (b, t, 0, 0))]
                 + [_const_spec(a) for a in args],
        out_specs=pl.BlockSpec((1, tt, D), lambda b, t: (b, t, 0)),
        out_shape=jax.ShapeDtypeStruct((B, T, D), jnp.float32),
        compiler_params=_params(("parallel", "parallel")),
    )(x, halo, *args)


def conformer_encoder_block(x, mask, params, *, n_heads, kernel_size, prenorm=False):
    ln = params["ln"]
    out = feed_forward(x, params["ff1"], ln, pre_ln=prenorm, final_ln=False)
    out, attn = rel_mhsa(out, mask, params["mhsa"], n_heads)
    out = conv_module(out, params["conv"], kernel_size)
    out = feed_forward(out, params["ff2"], ln, pre_ln=False, final_ln=not prenorm)
    return out, attn


# ----------------------------------------------------------------------------- params
def init_params(key, *, dim, ff_e, n_heads, kernel_size, tgt_len):
    d_head = dim // n_heads
    keys = iter(jax.random.split(key, 64))

    def nrm(shape, s=0.02):
        return jax.random.normal(next(keys), shape, jnp.float32) * s

    def ff_params(e):
        return dict(g=jnp.ones((1, dim), jnp.float32) + nrm((1, dim)), b=nrm((1, dim)),
                    w1=nrm((dim, dim * e)), b1=nrm((1, dim * e)),
                    w2=nrm((dim * e, dim)), b2=nrm((1, dim)))

    return dict(
        ff1=ff_params(ff_e),
        ff2=ff_params(4),          # second FFN uses the default expansion factor
        mhsa=dict(g=jnp.ones((1, dim), jnp.float32) + nrm((1, dim)), b=nrm((1, dim)),
                  wq=nrm((dim, dim)), bq=nrm((1, dim)),
                  wk=nrm((dim, dim)), bk=nrm((1, dim)),
                  wv=nrm((dim, dim)), bv=nrm((1, dim)),
                  wpos=nrm((dim, dim)),
                  pos_emb=nrm((2 * tgt_len - 1, dim)),
                  u=nrm((n_heads, d_head)), v=nrm((n_heads, d_head)),
                  wo=nrm((dim, dim)), bo=nrm((1, dim))),
        conv=dict(g=jnp.ones((1, dim), jnp.float32) + nrm((1, dim)), b=nrm((1, dim)),
                  w_pw1=nrm((dim, 2 * dim)), b_pw1=nrm((1, 2 * dim)),
                  w_dw=nrm((kernel_size, dim)), b_dw=nrm((1, dim)),
                  bn_g=jnp.ones((1, dim), jnp.float32), bn_b=jnp.zeros((1, dim), jnp.float32),
                  bn_m=jnp.zeros((1, dim), jnp.float32), bn_v=jnp.ones((1, dim), jnp.float32),
                  w_pw2=nrm((dim, dim)), b_pw2=nrm((1, dim))),
        ln=dict(g=jnp.ones((1, dim), jnp.float32), b=jnp.zeros((1, dim), jnp.float32)),
    )


# ----------------------------------------------------------------------------- main
if __name__ == "__main__":
    B, T, D = 2, 8, 32
    n_heads, ff_e, kernel_size, tgt_len = 4, 4, 3, 8

    key = jax.random.PRNGKey(0)
    kx, kp = jax.random.split(key)
    params = init_params(kp, dim=D, ff_e=ff_e, n_heads=n_heads,
                         kernel_size=kernel_size, tgt_len=tgt_len)

    x = jax.random.normal(kx, (B, T, D), jnp.float32)
    mask = jnp.ones((B, T), jnp.float32)
    mask = mask.at[1, 6:].set(0.0)   # mark last two positions of batch 1 as padding

    out, attn = conformer_encoder_block(x, mask, params,
                                        n_heads=n_heads, kernel_size=kernel_size,
                                        prenorm=False)
    jax.block_until_ready((out, attn))
    assert out.shape == (B, T, D) and attn.shape == (B, n_heads, T, T)
    print("KERNEL_OK")
</pallas_src>

<mosaic_0001>
module attributes {stable_mosaic.version = 11 : i64} {
  func.func @kern(%arg0: i32, %arg1: memref<8x128xf32, #tpu.memory_space<vmem>>, %arg2: memref<8x128xf32, #tpu.memory_space<vmem>>, %arg3: memref<8x128xf32, #tpu.memory_space<vmem>>) attributes {dimension_semantics = [#tpu.dimension_semantics<arbitrary>], iteration_bounds = array<i64: 2>, scalar_prefetch = 0 : i64, scratch_operands = 0 : i64, tpu.core_type = #tpu.core_type<tc>, window_params = [{transform_indices = @transform_0, window_bounds = array<i64: 8, 128>}, {pipeline_mode = #tpu.pipeline_mode<synchronous>, transform_indices = @transform_1, window_bounds = array<i64: 8, 128>}, {transform_indices = @transform_2, window_bounds = array<i64: 8, 128>}]} {
    %c0 = arith.constant 0 : index
    %c0_0 = arith.constant 0 : index
    %0 = vector.load %arg1[%c0, %c0_0] : memref<8x128xf32, #tpu.memory_space<vmem>>, vector<8x128xf32>
    %c0_1 = arith.constant 0 : index
    %c0_2 = arith.constant 0 : index
    %1 = vector.load %arg2[%c0_1, %c0_2] : memref<8x128xf32, #tpu.memory_space<vmem>>, vector<8x128xf32>
    %2 = arith.addf %0, %1 : vector<8x128xf32>
    %c0_3 = arith.constant 0 : index
    %c0_4 = arith.constant 0 : index
    %3 = vector.load %arg3[%c0_3, %c0_4] : memref<8x128xf32, #tpu.memory_space<vmem>>, vector<8x128xf32>
    tpu.vector_store %arg3[%c0_3, %c0_4], %2 {strides = array<i32>} : memref<8x128xf32, #tpu.memory_space<vmem>>, vector<8x128xf32>,
    return
  }
  func.func @transform_0(%arg0: i32) -> (i32, i32) {
    %c0_i32 = arith.constant 0 : i32
    %c0_i32_0 = arith.constant 0 : i32
    return %arg0, %c0_i32 : i32, i32
  }
  func.func @transform_1(%arg0: i32) -> (i32, i32) {
    %c0_i32 = arith.constant 0 : i32
    %c0_i32_0 = arith.constant 0 : i32
    %c0_i32_1 = arith.constant 0 : i32
    return %c0_i32, %c0_i32_0 : i32, i32
  }
  func.func @transform_2(%arg0: i32) -> (i32, i32) {
    %c0_i32 = arith.constant 0 : i32
    %c0_i32_0 = arith.constant 0 : i32
    return %arg0, %c0_i32 : i32, i32
  }
}

module attributes {stable_mosaic.version = 11 : i64} {
  func.func @_ff_kernel(%arg0: i32, %arg1: i32, %arg2: memref<1x8x32xf32, #tpu.memory_space<vmem>>, %arg3: memref<1x32xf32, #tpu.memory_space<vmem>>, %arg4: memref<1x32xf32, #tpu.memory_space<vmem>>, %arg5: memref<32x128xbf16, #tpu.memory_space<vmem>>, %arg6: memref<1x128xf32, #tpu.memory_space<vmem>>, %arg7: memref<128x32xbf16, #tpu.memory_space<vmem>>, %arg8: memref<1x32xf32, #tpu.memory_space<vmem>>, %arg9: memref<1x32xf32, #tpu.memory_space<vmem>>, %arg10: memref<1x32xf32, #tpu.memory_space<vmem>>, %arg11: memref<1x8x32xf32, #tpu.memory_space<vmem>>) attributes {dimension_semantics = [#tpu.dimension_semantics<parallel>, #tpu.dimension_semantics<parallel>], iteration_bounds = array<i64: 2, 1>, scalar_prefetch = 0 : i64, scratch_operands = 0 : i64, tpu.core_type = #tpu.core_type<tc>, window_params = [{transform_indices = @transform_0, window_bounds = array<i64: 1, 8, 32>}, {pipeline_mode = #tpu.pipeline_mode<synchronous>, transform_indices = @transform_1, window_bounds = array<i64: 1, 32>}, {pipeline_mode = #tpu.pipeline_mode<synchronous>, transform_indices = @transform_2, window_bounds = array<i64: 1, 32>}, {pipeline_mode = #tpu.pipeline_mode<synchronous>, transform_indices = @transform_3, window_bounds = array<i64: 32, 128>}, {pipeline_mode = #tpu.pipeline_mode<synchronous>, transform_indices = @transform_4, window_bounds = array<i64: 1, 128>}, {pipeline_mode = #tpu.pipeline_mode<synchronous>, transform_indices = @transform_5, window_bounds = array<i64: 128, 32>}, {pipeline_mode = #tpu.pipeline_mode<synchronous>, transform_indices = @transform_6, window_bounds = array<i64: 1, 32>}, {pipeline_mode = #tpu.pipeline_mode<synchronous>, transform_indices = @transform_7, window_bounds = array<i64: 1, 32>}, {pipeline_mode = #tpu.pipeline_mode<synchronous>, transform_indices = @transform_8, window_bounds = array<i64: 1, 32>}, {transform_indices = @transform_9, window_bounds = array<i64: 1, 8, 32>}]} {
    %c0 = arith.constant 0 : index
    %c0_0 = arith.constant 0 : index
    %c0_1 = arith.constant 0 : index
    %0 = vector.load %arg2[%c0, %c0_0, %c0_1] : memref<1x8x32xf32, #tpu.memory_space<vmem>>, vector<1x8x32xf32>
    %1 = vector.shape_cast %0 : vector<1x8x32xf32> to vector<8x32xf32>
    %c0_2 = arith.constant 0 : index
    %c0_3 = arith.constant 0 : index
    %2 = vector.load %arg3[%c0_2, %c0_3] : memref<1x32xf32, #tpu.memory_space<vmem>>, vector<1x32xf32>
    %c0_4 = arith.constant 0 : index
    %c0_5 = arith.constant 0 : index
    %3 = vector.load %arg4[%c0_4, %c0_5] : memref<1x32xf32, #tpu.memory_space<vmem>>, vector<1x32xf32>
    %cst = arith.constant dense<0.000000e+00> : vector<8xf32>
    %4 = vector.multi_reduction <add>, %1, %cst [1] : vector<8x32xf32> to vector<8xf32>
    %5 = vector.shape_cast %4 : vector<8xf32> to vector<8x1xf32>
    %cst_6 = arith.constant 3.200000e+01 : f32
    %6 = vector.broadcast %cst_6 : f32 to vector<8x1xf32>
    %7 = arith.divf %5, %6 : vector<8x1xf32>
    %8 = vector.broadcast %7 : vector<8x1xf32> to vector<8x32xf32>
    %9 = arith.subf %1, %8 : vector<8x32xf32>
    %10 = arith.mulf %9, %9 : vector<8x32xf32>
    %cst_7 = arith.constant dense<0.000000e+00> : vector<8xf32>
    %11 = vector.multi_reduction <add>, %10, %cst_7 [1] : vector<8x32xf32> to vector<8xf32>
    %12 = vector.shape_cast %11 : vector<8xf32> to vector<8x1xf32>
    %cst_8 = arith.constant 3.200000e+01 : f32
    %13 = vector.broadcast %cst_8 : f32 to vector<8x1xf32>
    %14 = arith.divf %12, %13 : vector<8x1xf32>
    %15 = vector.broadcast %7 : vector<8x1xf32> to vector<8x32xf32>
    %16 = arith.subf %1, %15 : vector<8x32xf32>
    %cst_9 = arith.constant 9.99999974E-6 : f32
    %17 = vector.broadcast %cst_9 : f32 to vector<8x1xf32>
    %18 = arith.addf %14, %17 : vector<8x1xf32>
    %19 = math.rsqrt %18 : vector<8x1xf32>
    %20 = vector.broadcast %19 : vector<8x1xf32> to vector<8x32xf32>
    %21 = arith.mulf %16, %20 : vector<8x32xf32>
    %22 = vector.broadcast %2 : vector<1x32xf32> to vector<8x32xf32>
    %23 = arith.mulf %21, %22 : vector<8x32xf32>
    %24 = vector.broadcast %3 : vector<1x32xf32> to vector<8x32xf32>
    %25 = arith.addf %23, %24 : vector<8x32xf32>
    %26 = arith.truncf %25 : vector<8x32xf32> to vector<8x32xbf16>
    %c0_10 = arith.constant 0 : index
    %c0_11 = arith.constant 0 : index
    %27 = vector.load %arg5[%c0_10, %c0_11] : memref<32x128xbf16, #tpu.memory_space<vmem>>, vector<32x128xbf16>
    %cst_12 = arith.constant dense<0.000000e+00> : vector<8x128xf32>
    %28 = tpu.matmul %26, %27, %cst_12 {dimension_numbers = #tpu.dot_dimension_numbers<[1], [0], [0], [1], [0, 0, 1, 1], [], []>} : vector<8x32xbf16>, vector<32x128xbf16>, vector<8x128xf32> -> vector<8x128xf32>
    %c0_13 = arith.constant 0 : index
    %c0_14 = arith.constant 0 : index
    %29 = vector.load %arg6[%c0_13, %c0_14] : memref<1x128xf32, #tpu.memory_space<vmem>>, vector<1x128xf32>
    %30 = vector.broadcast %29 : vector<1x128xf32> to vector<8x128xf32>
    %31 = arith.addf %28, %30 : vector<8x128xf32>
    %32 = arith.negf %31 : vector<8x128xf32>
    %33 = math.exp %32 : vector<8x128xf32>
    %cst_15 = arith.constant 1.000000e+00 : f32
    %34 = vector.broadcast %cst_15 : f32 to vector<8x128xf32>
    %35 = arith.addf %34, %33 : vector<8x128xf32>
    %36 = arith.divf %34, %35 : vector<8x128xf32>
    %37 = arith.mulf %31, %36 : vector<8x128xf32>
    %38 = arith.truncf %37 : vector<8x128xf32> to vector<8x128xbf16>
    %c0_16 = arith.constant 0 : index
    %c0_17 = arith.constant 0 : index
    %39 = vector.load %arg7[%c0_16, %c0_17] : memref<128x32xbf16, #tpu.memory_space<vmem>>, vector<128x32xbf16>
    %cst_18 = arith.constant dense<0.000000e+00> : vector<8x32xf32>
    %40 = tpu.matmul %38, %39, %cst_18 {dimension_numbers = #tpu.dot_dimension_numbers<[1], [0], [0], [1], [0, 0, 1, 1], [], []>} : vector<8x128xbf16>, vector<128x32xbf16>, vector<8x32xf32> -> vector<8x32xf32>
    %c0_19 = arith.constant 0 : index
    %c0_20 = arith.constant 0 : index
    %41 = vector.load %arg8[%c0_19, %c0_20] : memref<1x32xf32, #tpu.memory_space<vmem>>, vector<1x32xf32>
    %42 = vector.broadcast %41 : vector<1x32xf32> to vector<8x32xf32>
    %43 = arith.addf %40, %42 : vector<8x32xf32>
    %cst_21 = arith.constant 5.000000e-01 : f32
    %44 = vector.broadcast %cst_21 : f32 to vector<8x32xf32>
    %45 = arith.mulf %44, %43 : vector<8x32xf32>
    %46 = arith.addf %1, %45 : vector<8x32xf32>
    %c0_22 = arith.constant 0 : index
    %c0_23 = arith.constant 0 : index
    %c0_24 = arith.constant 0 : index
    %47 = vector.load %arg11[%c0_22, %c0_23, %c0_24] : memref<1x8x32xf32, #tpu.memory_space<vmem>>, vector<1x8x32xf32>
    %48 = vector.shape_cast %47 : vector<1x8x32xf32> to vector<8x32xf32>
    %49 = vector.shape_cast %46 : vector<8x32xf32> to vector<1x8x32xf32>
    tpu.vector_store %arg11[%c0_22, %c0_23, %c0_24], %49 {strides = array<i32>} : memref<1x8x32xf32, #tpu.memory_space<vmem>>, vector<1x8x32xf32>,
    return
  }
  func.func @transform_0(%arg0: i32, %arg1: i32) -> (i32, i32, i32) {
    %c0_i32 = arith.constant 0 : i32
    %c0_i32_0 = arith.constant 0 : i32
    return %arg0, %arg1, %c0_i32 : i32, i32, i32
  }
  func.func @transform_1(%arg0: i32, %arg1: i32) -> (i32, i32) {
    %c0_i32 = arith.constant 0 : i32
    %c0_i32_0 = arith.constant 0 : i32
    %c0_i32_1 = arith.constant 0 : i32
    return %c0_i32, %c0_i32_0 : i32, i32
  }
  func.func @transform_2(%arg0: i32, %arg1: i32) -> (i32, i32) {
    %c0_i32 = arith.constant 0 : i32
    %c0_i32_0 = arith.constant 0 : i32
    %c0_i32_1 = arith.constant 0 : i32
    return %c0_i32, %c0_i32_0 : i32, i32
  }
  func.func @transform_3(%arg0: i32, %arg1: i32) -> (i32, i32) {
    %c0_i32 = arith.constant 0 : i32
    %c0_i32_0 = arith.constant 0 : i32
    %c0_i32_1 = arith.constant 0 : i32
    return %c0_i32, %c0_i32_0 : i32, i32
  }
  func.func @transform_4(%arg0: i32, %arg1: i32) -> (i32, i32) {
    %c0_i32 = arith.constant 0 : i32
    %c0_i32_0 = arith.constant 0 : i32
    %c0_i32_1 = arith.constant 0 : i32
    return %c0_i32, %c0_i32_0 : i32, i32
  }
  func.func @transform_5(%arg0: i32, %arg1: i32) -> (i32, i32) {
    %c0_i32 = arith.constant 0 : i32
    %c0_i32_0 = arith.constant 0 : i32
    %c0_i32_1 = arith.constant 0 : i32
    return %c0_i32, %c0_i32_0 : i32, i32
  }
  func.func @transform_6(%arg0: i32, %arg1: i32) -> (i32, i32) {
    %c0_i32 = arith.constant 0 : i32
    %c0_i32_0 = arith.constant 0 : i32
    %c0_i32_1 = arith.constant 0 : i32
    return %c0_i32, %c0_i32_0 : i32, i32
  }
  func.func @transform_7(%arg0: i32, %arg1: i32) -> (i32, i32) {
    %c0_i32 = arith.constant 0 : i32
    %c0_i32_0 = arith.constant 0 : i32
    %c0_i32_1 = arith.constant 0 : i32
    return %c0_i32, %c0_i32_0 : i32, i32
  }
  func.func @transform_8(%arg0: i32, %arg1: i32) -> (i32, i32) {
    %c0_i32 = arith.constant 0 : i32
    %c0_i32_0 = arith.constant 0 : i32
    %c0_i32_1 = arith.constant 0 : i32
    return %c0_i32, %c0_i32_0 : i32, i32
  }
  func.func @transform_9(%arg0: i32, %arg1: i32) -> (i32, i32, i32) {
    %c0_i32 = arith.constant 0 : i32
    %c0_i32_0 = arith.constant 0 : i32
    return %arg0, %arg1, %c0_i32 : i32, i32, i32
  }
}

</mosaic_0001>

<llo_original>
// kernel: tpu_custom_call.1
$region0: #{tpu_custom_call.1}
  #allocation0 [shape = 'u32[]', space=smem, size = 0x4, offset = 0x4, fixed_abs, tag = 'smem constant byte address 0x4 - core index']
  #allocation1 [shape = 'u32[144,128]{1,0:T(1,128)}', space=vmem, size = 0x12000, scoped, tag = 'internal scratch']
  %s0 = inlined_call_operand.hbm [shape: f32[16,128], index: 0, kind: input, shape index: {}]
  %s1 = inlined_call_operand.hbm [shape: f32[8,128], index: 1, kind: input, shape index: {}]
  %s2 = inlined_call_operand.hbm [shape: f32[16,128], index: 2, kind: output, shape index: {}]
  %s3 = sld [smem:[#allocation0]]
  $region49: #{tpu_custom_call.1} parent=0
    _
  %s5 = ssub.s32 1, %s3
  %s6 = scalar_select 0, %s5, %s3
  $region1: #{tpu_custom_call.1} parent=0
    #allocation2 [shape = 'u8[8192]{0}', space=vmem, size = 0x2000, scoped, tag = 'input window, operand 0']
    #allocation3 [shape = 's32[2]{0}', space=sflag, size = 0x8, scoped, tag = 'scoped memory for tpu_custom_call.1']
    #allocation4 [shape = 's32[2]{0}', space=sflag, size = 0x8, scoped, tag = 'scoped memory for tpu_custom_call.1']
    #allocation5 [shape = 'u8[4096]{0}', space=vmem, size = 0x1000, scoped, tag = 'input window, operand 1, single buffered']
    #allocation6 [shape = 's32[1]{0}', space=sflag, size = 0x4, scoped, tag = 'scoped memory for tpu_custom_call.1']
    #allocation7 [shape = 'u8[8192]{0}', space=vmem, size = 0x2000, scoped, tag = 'output window, operand 0']
    %7 = vsyncpa [#allocation3], 0
    %s8 = scalar_lea.sflag [#allocation3], 1
    %9 = vsyncpa %s8, 0
    %10 = vsyncpa [#allocation6], 0
    %11 = vsyncpa [#allocation4], 0
    %s12 = scalar_lea.sflag [#allocation4], 1
    %13 = vsyncpa %s12, 0
    loop: start=0, step=1, limit=4
    $region2: #{tpu_custom_call.1} parent=1 // loop_pre_header
      _
    $region3: #{tpu_custom_call.1} parent=1 // loop_header
      %s15 = sphi 0, %s19
      %p16 = scmp.ge.s32.totalorder %s15, 4
      %s25 = sphi 0, %s27
      %s28 = sphi 0, %s25
      %s29 = sphi 0, %s28
      %s45 = sphi 0, %s29
      %s49 = sphi 0, %s49
      %s51 = sphi 0, %s49
      %s52 = sphi 0, %s51
      %s66 = sphi 0, %s52
      %s72 = sphi 0, %s74
      %s75 = sphi 0, %s72
      %s76 = sphi 0, %s75
      %s92 = sphi 0, %s76
    $region4: #{tpu_custom_call.1} parent=1 // loop_header_branch
      %18 = sbr.rel (%p16) target = $region8
    $region5: #{tpu_custom_call.1} parent=1 // loop_body
      %s20 = ssub.s32 %s15, 1
      %s21 = ssub.s32 %s15, 2
      %s22 = sadd.s32 %s15, 1
      %s23 = ssub.s32 %s15, %s22
      %p24 = scmp.eq.s32.totalorder %s23, 0
      %s26 = sadd.s32 %s25, 1
      %s27 = scalar_select %p24, %s25, %s26
      %p30 = pneg %p24
      %p31 = scmp.eq.s32.totalorder %s15, 1
      %p32 = por %p30, %p31
      %p33 = scmp.ne.s32.totalorder %s25, %s28
      %p34 = scmp.eq.s32.totalorder %s15, 0
      %p35 = por %p33, %p34
      %p36 = scmp.ne.s32.totalorder %s25, %s28
      %p37 = scmp.eq.s32.totalorder %s20, 1
      %p38 = por %p36, %p37
      %p39 = scmp.ne.s32.totalorder %s28, %s29
      %p40 = scmp.eq.s32.totalorder %s20, 0
      %p41 = por %p39, %p40
      %p42 = scmp.ne.s32.totalorder %s28, %s29
      %p43 = scmp.eq.s32.totalorder %s21, 1
      %p44 = por %p42, %p43
      %p46 = scmp.ne.s32.totalorder %s29, %s45
      %p47 = scmp.eq.s32.totalorder %s21, 0
      %p48 = por %p46, %p47
      %s50 = sadd.s32 %s49, 1
      %p53 = scmp.eq.s32.totalorder %s15, 1
      %p54 = scmp.ne.s32.totalorder %s49, %s51
      %p55 = scmp.eq.s32.totalorder %s15, 0
      %p56 = por %p54, %p55
      %p57 = scmp.ne.s32.totalorder %s49, %s51
      %p58 = scmp.eq.s32.totalorder %s20, 1
      %p59 = por %p57, %p58
      %p60 = scmp.ne.s32.totalorder %s51, %s52
      %p61 = scmp.eq.s32.totalorder %s20, 0
      %p62 = por %p60, %p61
      %p63 = scmp.ne.s32.totalorder %s51, %s52
      %p64 = scmp.eq.s32.totalorder %s21, 1
      %p65 = por %p63, %p64
      %p67 = scmp.ne.s32.totalorder %s52, %s66
      %p68 = scmp.eq.s32.totalorder %s21, 0
      %p69 = por %p67, %p68
      %s70 = ssub.s32 %s15, %s22
      %p71 = scmp.eq.s32.totalorder %s70, 0
      %s73 = sadd.s32 %s72, 1
      %s74 = scalar_select %p71, %s72, %s73
      %p77 = pneg %p71
      %p78 = scmp.eq.s32.totalorder %s15, 1
      %p79 = por %p77, %p78
      %p80 = scmp.ne.s32.totalorder %s72, %s75
      %p81 = scmp.eq.s32.totalorder %s15, 0
      %p82 = por %p80, %p81
      %p83 = scmp.ne.s32.totalorder %s72, %s75
      %p84 = scmp.eq.s32.totalorder %s20, 1
      %p85 = por %p83, %p84
      %p86 = scmp.ne.s32.totalorder %s75, %s76
      %p87 = scmp.eq.s32.totalorder %s20, 0
      %p88 = por %p86, %p87
      %p89 = scmp.ne.s32.totalorder %s75, %s76
      %p90 = scmp.eq.s32.totalorder %s21, 1
      %p91 = por %p89, %p90
      %p93 = scmp.ne.s32.totalorder %s76, %s92
      %p94 = scmp.eq.s32.totalorder %s21, 0
      %p95 = por %p93, %p94
      %p96 = scmp.le.s32.totalorder 1, %s15
      %p97 = scmp.lt.s32.totalorder %s15, 3
      %p98 = pnand %p96, %p97
      %p99 = pneg %p98
      // Predicated region
      $region9: #{tpu_custom_call.1} parent=5 // pred_check
        _
      $region10: #{tpu_custom_call.1} parent=5 // pred_check_branch
        %101 = sbr.rel (%p98) target = $region12
      $region11: #{tpu_custom_call.1} parent=5 // pred_region
        %s102 = ssub.s32 %s15, 1
        // Predicated region
        $region13: #{tpu_custom_call.1} parent=11 // pred_check
          %p103 = pneg %p62
        $region14: #{tpu_custom_call.1} parent=11 // pred_check_branch
          %105 = sbr.rel (%p103) target = $region16
        $region15: #{tpu_custom_call.1} parent=11 // pred_region
          %s107 = ssub.s32 128, 128
          %108 = vsyncadd [#allocation6], %s107
          %s110 = sshll.u32 [#allocation5], 4
          %s111 = int_to_ptr.vmem [resolvable:$true] %s110
          %113 = dma.hbm_to_vmem [thread:$0]  %s1, 128, %s111, [#allocation6]
        $region16: #{tpu_custom_call.1} parent=11 // pred_fallthru
          _
      $region12: #{tpu_custom_call.1} parent=5 // pred_fallthru
        _
      %p114 = scmp.lt.s32.totalorder %s15, 2
      // Predicated region
      $region17: #{tpu_custom_call.1} parent=5 // pred_check
        %p115 = pneg %p114
      $region18: #{tpu_custom_call.1} parent=5 // pred_check_branch
        %117 = sbr.rel (%p115) target = $region20
      $region19: #{tpu_custom_call.1} parent=5 // pred_region
        // Predicated region
        $region21: #{tpu_custom_call.1} parent=19 // pred_check
          %p118 = pneg %p35
        $region22: #{tpu_custom_call.1} parent=19 // pred_check_branch
          %120 = sbr.rel (%p118) target = $region24
        $region23: #{tpu_custom_call.1} parent=19 // pred_region
          %s121 = sand.u32 %s25, 1
          %s122 = scalar_lea.sflag [#allocation3], %s121
          %s123 = sand.u32 %s25, 1
          %s124 = smul.addr %s123, 8
          %s125 = scalar_lea.vmem [#allocation2], %s124
          %s127 = ssub.s32 128, 128
          %128 = vsyncadd %s122, %s127
          %s129 = smul.addr %s15, 128
          %s130 = scalar_lea.hbm %s0, %s129
          %s132 = sshll.u32 %s125, 4
          %s133 = int_to_ptr.vmem [resolvable:$true] %s132
          %135 = dma.hbm_to_vmem [thread:$0]  %s130, 128, %s133, %s122
        $region24: #{tpu_custom_call.1} parent=19 // pred_fallthru
          _
      $region20: #{tpu_custom_call.1} parent=5 // pred_fallthru
        _
      %p136 = scmp.le.s32.totalorder 1, %s15
      %p137 = scmp.lt.s32.totalorder %s15, 3
      %p138 = pnand %p136, %p137
      %p139 = pneg %p138
      // Predicated region
      $region25: #{tpu_custom_call.1} parent=5 // pred_check
        _
      $region26: #{tpu_custom_call.1} parent=5 // pred_check_branch
        %141 = sbr.rel (%p138) target = $region28
      $region27: #{tpu_custom_call.1} parent=5 // pred_region
        %s142 = ssub.s32 %s15, 1
        %s143 = sand.u32 %s28, 1
        %s144 = scalar_lea.sflag [#allocation3], %s143
        %s145 = sand.u32 %s28, 1
        %s146 = smul.addr %s145, 8
        %s147 = scalar_lea.vmem [#allocation2], %s146
        // Predicated region
        $region29: #{tpu_custom_call.1} parent=27 // pred_check
          %p148 = pneg %p41
        $region30: #{tpu_custom_call.1} parent=27 // pred_check_branch
          %150 = sbr.rel (%p148) target = $region32
        $region31: #{tpu_custom_call.1} parent=27 // pred_region
          %151 = dma.done %s144, 128
        $region32: #{tpu_custom_call.1} parent=27 // pred_fallthru
          _
        // Predicated region
        $region33: #{tpu_custom_call.1} parent=27 // pred_check
          %p152 = pneg %p62
        $region34: #{tpu_custom_call.1} parent=27 // pred_check_branch
          %154 = sbr.rel (%p152) target = $region36
        $region35: #{tpu_custom_call.1} parent=27 // pred_region
          %155 = dma.done [#allocation6], 128
        $region36: #{tpu_custom_call.1} parent=27 // pred_fallthru
          _
        %s156 = sand.u32 %s28, 1
        %s157 = scalar_lea.sflag [#allocation3], %s156
        %s158 = sand.u32 %s28, 1
        %s159 = smul.addr %s158, 8
        %s160 = scalar_lea.vmem [#allocation2], %s159
        %p161 = pneg %p41
        %p162 = pneg %p38
        %p163 = pneg %p62
        %p164 = pneg %p59
        %p165 = pneg %p88
        %p166 = pneg %p85
        %s167 = sand.u32 %s75, 1
        %s168 = scalar_lea.sflag [#allocation4], %s167
        %s169 = sand.u32 %s75, 1
        %s170 = smul.addr %s169, 8
        %s171 = scalar_lea.vmem [#allocation7], %s170
        %v172 = vld [vmem:[%s147] sm:$0xff]
        %v173 = vld [vmem:[#allocation5] sm:$0xff]
        %v174 = vadd.f32 %v172, %v173
        %175 = vst [vmem:[%s171] sm:$0xff] %v174
        %s176 = sand.u32 %s75, 1
        %s177 = scalar_lea.sflag [#allocation4], %s176
        %s178 = sand.u32 %s75, 1
        %s179 = smul.addr %s178, 8
        %s180 = scalar_lea.vmem [#allocation7], %s179
        // Predicated region
        $region37: #{tpu_custom_call.1} parent=27 // pred_check
          %p181 = pneg %p85
        $region38: #{tpu_custom_call.1} parent=27 // pred_check_branch
          %183 = sbr.rel (%p181) target = $region40
        $region39: #{tpu_custom_call.1} parent=27 // pred_region
          %s185 = ssub.s32 128, 128
          %186 = vsyncadd %s177, %s185
          %s187 = smul.addr %s20, 128
          %s188 = scalar_lea.hbm %s2, %s187
          %s190 = sshll.u32 %s180, 4
          %s191 = int_to_ptr.vmem [resolvable:$true] %s190
          %193 = dma.vmem_to_hbm [thread:$0]  %s191, 128, %s188, %s177
        $region40: #{tpu_custom_call.1} parent=27 // pred_fallthru
          _
      $region28: #{tpu_custom_call.1} parent=5 // pred_fallthru
        _
      %p194 = scmp.le.s32.totalorder 2, %s15
      // Predicated region
      $region41: #{tpu_custom_call.1} parent=5 // pred_check
        %p195 = pneg %p194
      $region42: #{tpu_custom_call.1} parent=5 // pred_check_branch
        %197 = sbr.rel (%p195) target = $region44
      $region43: #{tpu_custom_call.1} parent=5 // pred_region
        %s198 = ssub.s32 %s15, 2
        // Predicated region
        $region45: #{tpu_custom_call.1} parent=43 // pred_check
          %p199 = pneg %p91
        $region46: #{tpu_custom_call.1} parent=43 // pred_check_branch
          %201 = sbr.rel (%p199) target = $region48
        $region47: #{tpu_custom_call.1} parent=43 // pred_region
          %s202 = sand.u32 %s76, 1
          %s203 = scalar_lea.sflag [#allocation4], %s202
          %s204 = sand.u32 %s76, 1
          %s205 = smul.addr %s204, 8
          %s206 = scalar_lea.vmem [#allocation7], %s205
          %207 = dma.done %s203, 128
        $region48: #{tpu_custom_call.1} parent=43 // pred_fallthru
          _
      $region44: #{tpu_custom_call.1} parent=5 // pred_fallthru
        _
    $region6: #{tpu_custom_call.1} parent=1 // loop_footer
      %s19 = sadd.s32 1, %s15
    $region7: #{tpu_custom_call.1} parent=1 // loop_footer_branch
      %14 = sbr.rel target = $region3
    $region8: #{tpu_custom_call.1} parent=1 // loop_exit
      _
    %208 = vsyncpa [#allocation3], 1
    %s209 = scalar_lea.sflag [#allocation3], 1
    %210 = vsyncpa %s209, 1
    %211 = vsyncpa [#allocation6], 1
    %212 = vsyncpa [#allocation4], 1
    %s213 = scalar_lea.sflag [#allocation4], 1
    %214 = vsyncpa %s213, 1

// kernel: tpu_custom_call.1
$region0: #{tpu_custom_call.1}
  #allocation0 [shape = 'u32[]', space=smem, size = 0x4, offset = 0x4, fixed_abs, tag = 'smem constant byte address 0x4 - core index']
  #allocation1 [shape = 'u32[144,128]{1,0:T(1,128)}', space=vmem, size = 0x12000, scoped, tag = 'internal scratch']
  %s0 = inlined_call_operand.vmem [shape: f32[2,8,32], index: 0, kind: input, shape index: {}]
  %s1 = inlined_call_operand.vmem [shape: f32[1,32], index: 1, kind: input, shape index: {}]
  %s2 = inlined_call_operand.vmem [shape: f32[1,32], index: 2, kind: input, shape index: {}]
  %s3 = inlined_call_operand.vmem [shape: bf16[32,128], index: 3, kind: input, shape index: {}]
  %s4 = inlined_call_operand.vmem [shape: f32[1,128], index: 4, kind: input, shape index: {}]
  %s5 = inlined_call_operand.vmem [shape: bf16[128,32], index: 5, kind: input, shape index: {}]
  %s6 = inlined_call_operand.vmem [shape: f32[1,32], index: 6, kind: input, shape index: {}]
  %s7 = inlined_call_operand.vmem [shape: f32[1,32], index: 7, kind: input, shape index: {}]
  %s8 = inlined_call_operand.vmem [shape: f32[1,32], index: 8, kind: input, shape index: {}]
  %s9 = inlined_call_operand.hbm [shape: f32[2,8,32], index: 9, kind: output, shape index: {}]
  %s10 = sld [smem:[#allocation0]]
  $region69: #{tpu_custom_call.1} parent=0
    _
  %s12 = ssub.s32 1, %s10
  %s13 = scalar_select 0, %s12, %s10
  $region1: #{tpu_custom_call.1} parent=0
    #allocation2 [shape = 'u8[8192]{0}', space=vmem, size = 0x2000, scoped, tag = 'output window, operand 0']
    #allocation3 [shape = 's32[2]{0}', space=sflag, size = 0x8, scoped, tag = 'scoped memory for tpu_custom_call.1']
    %14 = vsyncpa [#allocation3], 0
    %s15 = scalar_lea.sflag [#allocation3], 1
    %16 = vsyncpa %s15, 0
    loop: start=0, step=1, limit=4
    $region2: #{tpu_custom_call.1} parent=1 // loop_pre_header
      _
    $region3: #{tpu_custom_call.1} parent=1 // loop_header
      %s18 = sphi 0, %s22
      %p19 = scmp.ge.s32.totalorder %s18, 4
      %s25 = sphi 0, %s37
      %s26 = sphi 0, %s33
      %s27 = sphi 0, %s25
      %s28 = sphi 0, %s26
      %s29 = sphi 0, %s27
      %s30 = sphi 0, %s28
      %s42 = sphi 0, %s44
      %s45 = sphi 0, %s42
      %s46 = sphi 0, %s45
      %s62 = sphi 0, %s46
      %s66 = sphi 0, %s66
      %s68 = sphi 0, %s66
      %s69 = sphi 0, %s68
      %s83 = sphi 0, %s69
      %s87 = sphi 0, %s87
      %s89 = sphi 0, %s87
      %s90 = sphi 0, %s89
      %s104 = sphi 0, %s90
      %s108 = sphi 0, %s108
      %s110 = sphi 0, %s108
      %s111 = sphi 0, %s110
      %s125 = sphi 0, %s111
      %s129 = sphi 0, %s129
      %s131 = sphi 0, %s129
      %s132 = sphi 0, %s131
      %s146 = sphi 0, %s132
      %s150 = sphi 0, %s150
      %s152 = sphi 0, %s150
      %s153 = sphi 0, %s152
      %s167 = sphi 0, %s153
      %s171 = sphi 0, %s171
      %s173 = sphi 0, %s171
      %s174 = sphi 0, %s173
      %s188 = sphi 0, %s174
      %s192 = sphi 0, %s192
      %s194 = sphi 0, %s192
      %s195 = sphi 0, %s194
      %s209 = sphi 0, %s195
      %s213 = sphi 0, %s213
      %s215 = sphi 0, %s213
      %s216 = sphi 0, %s215
      %s230 = sphi 0, %s216
      %s238 = sphi 0, %s240
      %s241 = sphi 0, %s238
      %s242 = sphi 0, %s241
      %s258 = sphi 0, %s242
    $region4: #{tpu_custom_call.1} parent=1 // loop_header_branch
      %21 = sbr.rel (%p19) target = $region8
    $region5: #{tpu_custom_call.1} parent=1 // loop_body
      %s23 = ssub.s32 %s18, 1
      %s24 = ssub.s32 %s18, 2
      %s31 = sadd.s32 1, %s26
      %p32 = scmp.ge.s32.totalorder %s31, 1
      %s33 = scalar_select %p32, 0, %s31
      %s34 = sadd.s32 1, %s25
      %s35 = scalar_select %p32, %s34, %s25
      %p36 = scmp.ge.s32.totalorder %s35, 2
      %s37 = scalar_select %p36, 0, %s35
      %s38 = ssub.s32 %s25, %s37
      %s39 = ssub.s32 %s26, %s33
      %s40 = sor.u32 %s38, %s39
      %p41 = scmp.eq.s32.totalorder %s40, 0
      %s43 = sadd.s32 %s42, 1
      %s44 = scalar_select %p41, %s42, %s43
      %p47 = pneg %p41
      %p48 = scmp.eq.s32.totalorder %s18, 1
      %p49 = por %p47, %p48
      %p50 = scmp.ne.s32.totalorder %s42, %s45
      %p51 = scmp.eq.s32.totalorder %s18, 0
      %p52 = por %p50, %p51
      %p53 = scmp.ne.s32.totalorder %s42, %s45
      %p54 = scmp.eq.s32.totalorder %s23, 1
      %p55 = por %p53, %p54
      %p56 = scmp.ne.s32.totalorder %s45, %s46
      %p57 = scmp.eq.s32.totalorder %s23, 0
      %p58 = por %p56, %p57
      %p59 = scmp.ne.s32.totalorder %s45, %s46
      %p60 = scmp.eq.s32.totalorder %s24, 1
      %p61 = por %p59, %p60
      %p63 = scmp.ne.s32.totalorder %s46, %s62
      %p64 = scmp.eq.s32.totalorder %s24, 0
      %p65 = por %p63, %p64
      %s67 = sadd.s32 %s66, 1
      %p70 = scmp.eq.s32.totalorder %s18, 1
      %p71 = scmp.ne.s32.totalorder %s66, %s68
      %p72 = scmp.eq.s32.totalorder %s18, 0
      %p73 = por %p71, %p72
      %p74 = scmp.ne.s32.totalorder %s66, %s68
      %p75 = scmp.eq.s32.totalorder %s23, 1
      %p76 = por %p74, %p75
      %p77 = scmp.ne.s32.totalorder %s68, %s69
      %p78 = scmp.eq.s32.totalorder %s23, 0
      %p79 = por %p77, %p78
      %p80 = scmp.ne.s32.totalorder %s68, %s69
      %p81 = scmp.eq.s32.totalorder %s24, 1
      %p82 = por %p80, %p81
      %p84 = scmp.ne.s32.totalorder %s69, %s83
      %p85 = scmp.eq.s32.totalorder %s24, 0
      %p86 = por %p84, %p85
      %s88 = sadd.s32 %s87, 1
      %p91 = scmp.eq.s32.totalorder %s18, 1
      %p92 = scmp.ne.s32.totalorder %s87, %s89
      %p93 = scmp.eq.s32.totalorder %s18, 0
      %p94 = por %p92, %p93
      %p95 = scmp.ne.s32.totalorder %s87, %s89
      %p96 = scmp.eq.s32.totalorder %s23, 1
      %p97 = por %p95, %p96
      %p98 = scmp.ne.s32.totalorder %s89, %s90
      %p99 = scmp.eq.s32.totalorder %s23, 0
      %p100 = por %p98, %p99
      %p101 = scmp.ne.s32.totalorder %s89, %s90
      %p102 = scmp.eq.s32.totalorder %s24, 1
      %p103 = por %p101, %p102
      %p105 = scmp.ne.s32.totalorder %s90, %s104
      %p106 = scmp.eq.s32.totalorder %s24, 0
      %p107 = por %p105, %p106
      %s109 = sadd.s32 %s108, 1
      %p112 = scmp.eq.s32.totalorder %s18, 1
      %p113 = scmp.ne.s32.totalorder %s108, %s110
      %p114 = scmp.eq.s32.totalorder %s18, 0
      %p115 = por %p113, %p114
      %p116 = scmp.ne.s32.totalorder %s108, %s110
      %p117 = scmp.eq.s32.totalorder %s23, 1
      %p118 = por %p116, %p117
      %p119 = scmp.ne.s32.totalorder %s110, %s111
      %p120 = scmp.eq.s32.totalorder %s23, 0
      %p121 = por %p119, %p120
      %p122 = scmp.ne.s32.totalorder %s110, %s111
      %p123 = scmp.eq.s32.totalorder %s24, 1
      %p124 = por %p122, %p123
      %p126 = scmp.ne.s32.totalorder %s111, %s125
      %p127 = scmp.eq.s32.totalorder %s24, 0
      %p128 = por %p126, %p127
      %s130 = sadd.s32 %s129, 1
      %p133 = scmp.eq.s32.totalorder %s18, 1
      %p134 = scmp.ne.s32.totalorder %s129, %s131
      %p135 = scmp.eq.s32.totalorder %s18, 0
      %p136 = por %p134, %p135
      %p137 = scmp.ne.s32.totalorder %s129, %s131
      %p138 = scmp.eq.s32.totalorder %s23, 1
      %p139 = por %p137, %p138
      %p140 = scmp.ne.s32.totalorder %s131, %s132
      %p141 = scmp.eq.s32.totalorder %s23, 0
      %p142 = por %p140, %p141
      %p143 = scmp.ne.s32.totalorder %s131, %s132
      %p144 = scmp.eq.s32.totalorder %s24, 1
      %p145 = por %p143, %p144
      %p147 = scmp.ne.s32.totalorder %s132, %s146
      %p148 = scmp.eq.s32.totalorder %s24, 0
      %p149 = por %p147, %p148
      %s151 = sadd.s32 %s150, 1
      %p154 = scmp.eq.s32.totalorder %s18, 1
      %p155 = scmp.ne.s32.totalorder %s150, %s152
      %p156 = scmp.eq.s32.totalorder %s18, 0
      %p157 = por %p155, %p156
      %p158 = scmp.ne.s32.totalorder %s150, %s152
      %p159 = scmp.eq.s32.totalorder %s23, 1
      %p160 = por %p158, %p159
      %p161 = scmp.ne.s32.totalorder %s152, %s153
      %p162 = scmp.eq.s32.totalorder %s23, 0
      %p163 = por %p161, %p162
      %p164 = scmp.ne.s32.totalorder %s152, %s153
      %p165 = scmp.eq.s32.totalorder %s24, 1
      %p166 = por %p164, %p165
      %p168 = scmp.ne.s32.totalorder %s153, %s167
      %p169 = scmp.eq.s32.totalorder %s24, 0
      %p170 = por %p168, %p169
      %s172 = sadd.s32 %s171, 1
      %p175 = scmp.eq.s32.totalorder %s18, 1
      %p176 = scmp.ne.s32.totalorder %s171, %s173
      %p177 = scmp.eq.s32.totalorder %s18, 0
      %p178 = por %p176, %p177
      %p179 = scmp.ne.s32.totalorder %s171, %s173
      %p180 = scmp.eq.s32.totalorder %s23, 1
      %p181 = por %p179, %p180
      %p182 = scmp.ne.s32.totalorder %s173, %s174
      %p183 = scmp.eq.s32.totalorder %s23, 0
      %p184 = por %p182, %p183
      %p185 = scmp.ne.s32.totalorder %s173, %s174
      %p186 = scmp.eq.s32.totalorder %s24, 1
      %p187 = por %p185, %p186
      %p189 = scmp.ne.s32.totalorder %s174, %s188
      %p190 = scmp.eq.s32.totalorder %s24, 0
      %p191 = por %p189, %p190
      %s193 = sadd.s32 %s192, 1
      %p196 = scmp.eq.s32.totalorder %s18, 1
      %p197 = scmp.ne.s32.totalorder %s192, %s194
      %p198 = scmp.eq.s32.totalorder %s18, 0
      %p199 = por %p197, %p198
      %p200 = scmp.ne.s32.totalorder %s192, %s194
      %p201 = scmp.eq.s32.totalorder %s23, 1
      %p202 = por %p200, %p201
      %p203 = scmp.ne.s32.totalorder %s194, %s195
      %p204 = scmp.eq.s32.totalorder %s23, 0
      %p205 = por %p203, %p204
      %p206 = scmp.ne.s32.totalorder %s194, %s195
      %p207 = scmp.eq.s32.totalorder %s24, 1
      %p208 = por %p206, %p207
      %p210 = scmp.ne.s32.totalorder %s195, %s209
      %p211 = scmp.eq.s32.totalorder %s24, 0
      %p212 = por %p210, %p211
      %s214 = sadd.s32 %s213, 1
      %p217 = scmp.eq.s32.totalorder %s18, 1
      %p218 = scmp.ne.s32.totalorder %s213, %s215
      %p219 = scmp.eq.s32.totalorder %s18, 0
      %p220 = por %p218, %p219
      %p221 = scmp.ne.s32.totalorder %s213, %s215
      %p222 = scmp.eq.s32.totalorder %s23, 1
      %p223 = por %p221, %p222
      %p224 = scmp.ne.s32.totalorder %s215, %s216
      %p225 = scmp.eq.s32.totalorder %s23, 0
      %p226 = por %p224, %p225
      %p227 = scmp.ne.s32.totalorder %s215, %s216
      %p228 = scmp.eq.s32.totalorder %s24, 1
      %p229 = por %p227, %p228
      %p231 = scmp.ne.s32.totalorder %s216, %s230
      %p232 = scmp.eq.s32.totalorder %s24, 0
      %p233 = por %p231, %p232
      %s234 = ssub.s32 %s25, %s37
      %s235 = ssub.s32 %s26, %s33
      %s236 = sor.u32 %s234, %s235
      %p237 = scmp.eq.s32.totalorder %s236, 0
      %s239 = sadd.s32 %s238, 1
      %s240 = scalar_select %p237, %s238, %s239
      %p243 = pneg %p237
      %p244 = scmp.eq.s32.totalorder %s18, 1
      %p245 = por %p243, %p244
      %p246 = scmp.ne.s32.totalorder %s238, %s241
      %p247 = scmp.eq.s32.totalorder %s18, 0
      %p248 = por %p246, %p247
      %p249 = scmp.ne.s32.totalorder %s238, %s241
      %p250 = scmp.eq.s32.totalorder %s23, 1
      %p251 = por %p249, %p250
      %p252 = scmp.ne.s32.totalorder %s241, %s242
      %p253 = scmp.eq.s32.totalorder %s23, 0
      %p254 = por %p252, %p253
      %p255 = scmp.ne.s32.totalorder %s241, %s242
      %p256 = scmp.eq.s32.totalorder %s24, 1
      %p257 = por %p255, %p256
      %p259 = scmp.ne.s32.totalorder %s242, %s258
      %p260 = scmp.eq.s32.totalorder %s24, 0
      %p261 = por %p259, %p260
      %p262 = scmp.le.s32.totalorder 1, %s18
      %p263 = scmp.lt.s32.totalorder %s18, 3
      %p264 = pnand %p262, %p263
      %p265 = pneg %p264
      // Predicated region
      $region9: #{tpu_custom_call.1} parent=5 // pred_check
        _
      $region10: #{tpu_custom_call.1} parent=5 // pred_check_branch
        %267 = sbr.rel (%p264) target = $region12
      $region11: #{tpu_custom_call.1} parent=5 // pred_region
        %s268 = ssub.s32 %s18, 1
        // Predicated region
        $region13: #{tpu_custom_call.1} parent=11 // pred_check
          %p269 = pneg %p79
        $region14: #{tpu_custom_call.1} parent=11 // pred_check_branch
          %271 = sbr.rel (%p269) target = $region16
        $region15: #{tpu_custom_call.1} parent=11 // pred_region
          _
        $region16: #{tpu_custom_call.1} parent=11 // pred_fallthru
          _
        // Predicated region
        $region17: #{tpu_custom_call.1} parent=11 // pred_check
          %p272 = pneg %p100
        $region18: #{tpu_custom_call.1} parent=11 // pred_check_branch
          %274 = sbr.rel (%p272) target = $region20
        $region19: #{tpu_custom_call.1} parent=11 // pred_region
          _
        $region20: #{tpu_custom_call.1} parent=11 // pred_fallthru
          _
        // Predicated region
        $region21: #{tpu_custom_call.1} parent=11 // pred_check
          %p275 = pneg %p121
        $region22: #{tpu_custom_call.1} parent=11 // pred_check_branch
          %277 = sbr.rel (%p275) target = $region24
        $region23: #{tpu_custom_call.1} parent=11 // pred_region
          _
        $region24: #{tpu_custom_call.1} parent=11 // pred_fallthru
          _
        // Predicated region
        $region25: #{tpu_custom_call.1} parent=11 // pred_check
          %p278 = pneg %p142
        $region26: #{tpu_custom_call.1} parent=11 // pred_check_branch
          %280 = sbr.rel (%p278) target = $region28
        $region27: #{tpu_custom_call.1} parent=11 // pred_region
          _
        $region28: #{tpu_custom_call.1} parent=11 // pred_fallthru
          _
        // Predicated region
        $region29: #{tpu_custom_call.1} parent=11 // pred_check
          %p281 = pneg %p163
        $region30: #{tpu_custom_call.1} parent=11 // pred_check_branch
          %283 = sbr.rel (%p281) target = $region32
        $region31: #{tpu_custom_call.1} parent=11 // pred_region
          _
        $region32: #{tpu_custom_call.1} parent=11 // pred_fallthru
          _
        // Predicated region
        $region33: #{tpu_custom_call.1} parent=11 // pred_check
          %p284 = pneg %p184
        $region34: #{tpu_custom_call.1} parent=11 // pred_check_branch
          %286 = sbr.rel (%p284) target = $region36
        $region35: #{tpu_custom_call.1} parent=11 // pred_region
          _
        $region36: #{tpu_custom_call.1} parent=11 // pred_fallthru
          _
        // Predicated region
        $region37: #{tpu_custom_call.1} parent=11 // pred_check
          %p287 = pneg %p205
        $region38: #{tpu_custom_call.1} parent=11 // pred_check_branch
          %289 = sbr.rel (%p287) target = $region40
        $region39: #{tpu_custom_call.1} parent=11 // pred_region
          _
        $region40: #{tpu_custom_call.1} parent=11 // pred_fallthru
          _
        // Predicated region
        $region41: #{tpu_custom_call.1} parent=11 // pred_check
          %p290 = pneg %p226
        $region42: #{tpu_custom_call.1} parent=11 // pred_check_branch
          %292 = sbr.rel (%p290) target = $region44
        $region43: #{tpu_custom_call.1} parent=11 // pred_region
          _
        $region44: #{tpu_custom_call.1} parent=11 // pred_fallthru
          _
      $region12: #{tpu_custom_call.1} parent=5 // pred_fallthru
        _
      %p293 = scmp.lt.s32.totalorder %s18, 2
      // Predicated region
      $region45: #{tpu_custom_call.1} parent=5 // pred_check
        %p294 = pneg %p293
      $region46: #{tpu_custom_call.1} parent=5 // pred_check_branch
        %296 = sbr.rel (%p294) target = $region48
      $region47: #{tpu_custom_call.1} parent=5 // pred_region
        // Predicated region
        $region49: #{tpu_custom_call.1} parent=47 // pred_check
          %p297 = pneg %p52
        $region50: #{tpu_custom_call.1} parent=47 // pred_check_branch
          %299 = sbr.rel (%p297) target = $region52
        $region51: #{tpu_custom_call.1} parent=47 // pred_region
          %p300 = scmp.lt.s32.totalorder %s25, 1
          %s301 = scalar_select %p300, %s25, 1
          %p302 = scmp.lt.s32.totalorder %s26, 0
          %s303 = scalar_select %p302, %s26, 0
          %s304 = sadd.s32 %s303, %s301
          %s305 = smul.addr %s304, 8
          %s306 = scalar_lea.vmem %s0, %s305
        $region52: #{tpu_custom_call.1} parent=47 // pred_fallthru
          _
      $region48: #{tpu_custom_call.1} parent=5 // pred_fallthru
        _
      %p307 = scmp.le.s32.totalorder 1, %s18
      %p308 = scmp.lt.s32.totalorder %s18, 3
      %p309 = pnand %p307, %p308
      %p310 = pneg %p309
      // Predicated region
      $region53: #{tpu_custom_call.1} parent=5 // pred_check
        _
      $region54: #{tpu_custom_call.1} parent=5 // pred_check_branch
        %312 = sbr.rel (%p309) target = $region56
      $region55: #{tpu_custom_call.1} parent=5 // pred_region
        %s313 = ssub.s32 %s18, 1
        %p314 = scmp.lt.s32.totalorder %s27, 1
        %s315 = scalar_select %p314, %s27, 1
        %p316 = scmp.lt.s32.totalorder %s28, 0
        %s317 = scalar_select %p316, %s28, 0
        %s318 = sadd.s32 %s317, %s315
        %s319 = smul.addr %s318, 8
        %s320 = scalar_lea.vmem %s0, %s319
        %p321 = pneg %p58
        %p322 = pneg %p55
        %p323 = pneg %p79
        %p324 = pneg %p76
        %p325 = pneg %p100
        %p326 = pneg %p97
        %p327 = pneg %p121
        %p328 = pneg %p118
        %p329 = pneg %p142
        %p330 = pneg %p139
        %p331 = pneg %p163
        %p332 = pneg %p160
        %p333 = pneg %p184
        %p334 = pneg %p181
        %p335 = pneg %p205
        %p336 = pneg %p202
        %p337 = pneg %p226
        %p338 = pneg %p223
        %p339 = pneg %p254
        %p340 = pneg %p251
        %s341 = sand.u32 %s241, 1
        %s342 = scalar_lea.sflag [#allocation3], %s341
        %s343 = sand.u32 %s241, 1
        %s344 = smul.addr %s343, 8
        %s345 = scalar_lea.vmem [#allocation2], %s344
        %p346 = scmp.lt.s32.totalorder %s27, 1
        %s347 = scalar_select %p346, %s27, 1
        %p348 = scmp.lt.s32.totalorder %s28, 0
        %s349 = scalar_select %p348, %s28, 0
        %s350 = sadd.s32 %s349, %s347
        %s351 = smul.addr %s350, 8
        %s352 = scalar_lea.vmem %s0, %s351
        %v354 = vld [vmem:[%s352] sm:$0xff]
        %v355 = vld [vmem:[%s1] sm:$0x1]
        %v356 = vld [vmem:[%s2] sm:$0x1]
        %vm357 = vcmask 261120
        %v358 = vsel %vm357, %v354, 0.0
        %359 = vadd.xlane.f32.xlu0 %v358
        %v360 = vpop.xlane.xlu0 %359
        %v361 = vrcp.pop 32.0
        %v362 = vmul.f32 %v360, %v361
        %v363 = vsub.f32 %v354, %v362
        %v364 = vmul.f32 %v363, %v363
        %v365 = vsel %vm357, %v364, 0.0
        %366 = vadd.xlane.f32.xlu0 %v365
        %v367 = vpop.xlane.xlu0 %366
        %v368 = vmul.f32 %v367, %v361
        %v369 = vadd.f32 %v368, 1e-05
        %v370 = vrsqrt.pop %v369
        %v371 = vmul.f32 %v363, %v370
        %v373 = vlaneseq
        %v374 = vshrl.u32 %v373, 7
        %v375 = vsub.s32 0, %v374
        %v376 = vrot.slane %v355, %v375
        %v378 = vmul.f32 %v371, %v376
        %v380 = vlaneseq
        %v381 = vshrl.u32 %v380, 7
        %v382 = vsub.s32 0, %v381
        %v383 = vrot.slane %v356, %v382
        %v385 = vadd.f32 %v378, %v383
        %v386 = vpack.c.bf16 %v385, %v385
        %v387 = vld [vmem:[%s3] sm:$0xf]
        %v388 = vld [vmem:[%s3 + $0x4] sm:$0xf]
        %v389 = vld [vmem:[%s3 + $0x8] sm:$0xf]
        %v390 = vld [vmem:[%s3 + $0xc] sm:$0xf]
        %v391 = vld [vmem:[%s4] sm:$0x1]
        %v393 = vlaneseq
        %v394 = vshrl.u32 %v393, 7
        %v395 = vsub.s32 0, %v394
        %v396 = vrot.slane %v391, %v395
        %v402 = vunpack.c.l.b16 %v387
        %v403 = vunpack.c.l.b16 %v388
        %v404 = vunpack.c.l.b16 %v389
        %v405 = vunpack.c.l.b16 %v390
        %v406 = vpack.c.b16 %v403, %v402
        %v407 = vpack.c.b16 %v405, %v404
        %v411 = vsel %vm357, %v386, 0
        %413 = vmatprep.subr.bf16.mxu0 0
        %414 = vmatpush1.bf16.msra.mxu0 %v406
        %415 = vmatprep.subr.bf16.mxu0 0
        %416 = vmatpush1.bf16.msra.mxu0 %v407
        %417 = vmatprep.subr.bf16.mxu0 0
        %418 = vmatpush1.bf16.msra.mxu0 0
        %419 = vmatprep.subr.bf16.mxu0 0
        %420 = vmatpush1.bf16.msra.mxu0 0
        %421 = vmatprep.subr.bf16.mxu0 0
        %422 = vmatpush1.bf16.msra.mxu0 0
        %423 = vmatprep.subr.bf16.mxu0 0
        %424 = vmatpush1.bf16.msra.mxu0 0
        %425 = vmatprep.subr.bf16.mxu0 0
        %426 = vmatpush1.bf16.msra.mxu0 0
        %427 = vmatprep.subr.bf16.mxu0 0
        %428 = vmatpush1.bf16.msra.mxu0 0
        %429 = vmatprep.subr.bf16.mxu0 0
        %430 = vmatpush1.bf16.msra.mxu0 0
        %431 = vmatprep.subr.bf16.mxu0 0
        %432 = vmatpush1.bf16.msra.mxu0 0
        %433 = vmatprep.subr.bf16.mxu0 0
        %434 = vmatpush1.bf16.msra.mxu0 0
        %435 = vmatprep.subr.bf16.mxu0 0
        %436 = vmatpush1.bf16.msra.mxu0 0
        %437 = vmatprep.subr.bf16.mxu0 0
        %438 = vmatpush1.bf16.msra.mxu0 0
        %439 = vmatprep.subr.bf16.mxu0 0
        %440 = vmatpush1.bf16.msra.mxu0 0
        %441 = vmatprep.subr.bf16.mxu0 0
        %442 = vmatpush1.bf16.msra.mxu0 0
        %443 = vmatprep.subr.bf16.mxu0 0
        %444 = vmatpush1.bf16.msra.mxu0 0
        %445 = vmatprep.mubr.bf16.mxu0 0
        %446 = vmatmul.mubr.bf16.gmra.mrb[0].mxu0 %v411
        %v447 = vpop.f32.mrb[0].mxu0
        %v448 = vadd.f32 %v396, %v447
        %v449 = vpop.f32.mrb[0].mxu0
        %v450 = vpop.f32.mrb[0].mxu0
        %v451 = vpop.f32.mrb[0].mxu0
        %452 = vdwg.mxu0
        %v453 = vxor.u32 %v448, 2147483648
        %v454 = vmul.f32 %v453, 1.442695
        %v455 = vpow.pop %v454
        %v456 = vadd.f32 %v455, 1.0
        %v457 = vrcp.pop %v456
        %v458 = vmul.f32 1.0, %v457
        %v459 = vmul.f32 %v448, %v458
        %v460 = vpack.c.bf16 %v459, %v459
        %v461 = vld [vmem:[%s5] sm:$0xf]
        %v462 = vld [vmem:[%s5 + $0x4] sm:$0xf]
        %v463 = vld [vmem:[%s5 + $0x8] sm:$0xf]
        %v464 = vld [vmem:[%s5 + $0xc] sm:$0xf]
        %v465 = vld [vmem:[%s5 + $0x10] sm:$0xf]
        %v466 = vld [vmem:[%s5 + $0x14] sm:$0xf]
        %v467 = vld [vmem:[%s5 + $0x18] sm:$0xf]
        %v468 = vld [vmem:[%s5 + $0x1c] sm:$0xf]
        %v469 = vld [vmem:[%s5 + $0x20] sm:$0xf]
        %v470 = vld [vmem:[%s5 + $0x24] sm:$0xf]
        %v471 = vld [vmem:[%s5 + $0x28] sm:$0xf]
        %v472 = vld [vmem:[%s5 + $0x2c] sm:$0xf]
        %v473 = vld [vmem:[%s5 + $0x30] sm:$0xf]
        %v474 = vld [vmem:[%s5 + $0x34] sm:$0xf]
        %v475 = vld [vmem:[%s5 + $0x38] sm:$0xf]
        %v476 = vld [vmem:[%s5 + $0x3c] sm:$0xf]
        %v477 = vld [vmem:[%s6] sm:$0x1]
        %v479 = vlaneseq
        %v480 = vshrl.u32 %v479, 7
        %v481 = vsub.s32 0, %v480
        %v482 = vrot.slane %v477, %v481
        %v500 = vunpack.c.l.b16 %v461
        %v501 = vunpack.c.l.b16 %v462
        %v502 = vunpack.c.l.b16 %v463
        %v503 = vunpack.c.l.b16 %v464
        %v504 = vunpack.c.l.b16 %v465
        %v505 = vunpack.c.l.b16 %v466
        %v506 = vunpack.c.l.b16 %v467
        %v507 = vunpack.c.l.b16 %v468
        %v508 = vunpack.c.l.b16 %v469
        %v509 = vunpack.c.l.b16 %v470
        %v510 = vunpack.c.l.b16 %v471
        %v511 = vunpack.c.l.b16 %v472
        %v512 = vunpack.c.l.b16 %v473
        %v513 = vunpack.c.l.b16 %v474
        %v514 = vunpack.c.l.b16 %v475
        %v515 = vunpack.c.l.b16 %v476
        %v516 = vpack.c.b16 %v501, %v500
        %v517 = vpack.c.b16 %v503, %v502
        %v518 = vpack.c.b16 %v505, %v504
        %v519 = vpack.c.b16 %v507, %v506
        %v520 = vpack.c.b16 %v509, %v508
        %v521 = vpack.c.b16 %v511, %v510
        %v522 = vpack.c.b16 %v513, %v512
        %v523 = vpack.c.b16 %v515, %v514
        %532 = vmatprep.subr.bf16.mxu0 0
        %533 = vmatpush1.bf16.msra.mxu0 %v516
        %534 = vmatprep.subr.bf16.mxu0 0
        %535 = vmatpush1.bf16.msra.mxu0 %v517
        %536 = vmatprep.subr.bf16.mxu0 0
        %537 = vmatpush1.bf16.msra.mxu0 %v518
        %538 = vmatprep.subr.bf16.mxu0 0
        %539 = vmatpush1.bf16.msra.mxu0 %v519
        %540 = vmatprep.subr.bf16.mxu0 0
        %541 = vmatpush1.bf16.msra.mxu0 %v520
        %542 = vmatprep.subr.bf16.mxu0 0
        %543 = vmatpush1.bf16.msra.mxu0 %v521
        %544 = vmatprep.subr.bf16.mxu0 0
        %545 = vmatpush1.bf16.msra.mxu0 %v522
        %546 = vmatprep.subr.bf16.mxu0 0
        %547 = vmatpush1.bf16.msra.mxu0 %v523
        %548 = vmatprep.subr.bf16.mxu0 0
        %549 = vmatpush1.bf16.msra.mxu0 0
        %550 = vmatprep.subr.bf16.mxu0 0
        %551 = vmatpush1.bf16.msra.mxu0 0
        %552 = vmatprep.subr.bf16.mxu0 0
        %553 = vmatpush1.bf16.msra.mxu0 0
        %554 = vmatprep.subr.bf16.mxu0 0
        %555 = vmatpush1.bf16.msra.mxu0 0
        %556 = vmatprep.subr.bf16.mxu0 0
        %557 = vmatpush1.bf16.msra.mxu0 0
        %558 = vmatprep.subr.bf16.mxu0 0
        %559 = vmatpush1.bf16.msra.mxu0 0
        %560 = vmatprep.subr.bf16.mxu0 0
        %561 = vmatpush1.bf16.msra.mxu0 0
        %562 = vmatprep.subr.bf16.mxu0 0
        %563 = vmatpush1.bf16.msra.mxu0 0
        %564 = vmatprep.mubr.bf16.mxu0 0
        %565 = vmatmul.mubr.bf16.gmra.mrb[0].mxu0 %v460
        %v566 = vpop.f32.mrb[0].mxu0
        %v567 = vadd.f32 %v482, %v566
        %v568 = vpop.f32.mrb[0].mxu0
        %v569 = vpop.f32.mrb[0].mxu0
        %v570 = vpop.f32.mrb[0].mxu0
        %571 = vdwg.mxu0
        %v572 = vmul.f32 %v567, 0.5
        %v573 = vadd.f32 %v354, %v572
        %574 = vst.msk [vmem:[%s345] sm:$0xff] %vm357, %v573
        %s575 = sand.u32 %s241, 1
        %s576 = scalar_lea.sflag [#allocation3], %s575
        %s577 = sand.u32 %s241, 1
        %s578 = smul.addr %s577, 8
        %s579 = scalar_lea.vmem [#allocation2], %s578
        // Predicated region
        $region57: #{tpu_custom_call.1} parent=55 // pred_check
          %p580 = pneg %p251
        $region58: #{tpu_custom_call.1} parent=55 // pred_check_branch
          %582 = sbr.rel (%p580) target = $region60
        $region59: #{tpu_custom_call.1} parent=55 // pred_region
          %s584 = ssub.s32 128, 128
          %585 = vsyncadd %s576, %s584
          %s586 = sadd.s32 %s28, %s27
          %s587 = smul.addr %s586, 128
          %s588 = scalar_lea.hbm %s9, %s587
          %s590 = sshll.u32 %s579, 4
          %s591 = int_to_ptr.vmem [resolvable:$true] %s590
          %593 = dma.vmem_to_hbm [thread:$0]  %s591, 128, %s588, %s576
        $region60: #{tpu_custom_call.1} parent=55 // pred_fallthru
          _
      $region56: #{tpu_custom_call.1} parent=5 // pred_fallthru
        _
      %p594 = scmp.le.s32.totalorder 2, %s18
      // Predicated region
      $region61: #{tpu_custom_call.1} parent=5 // pred_check
        %p595 = pneg %p594
      $region62: #{tpu_custom_call.1} parent=5 // pred_check_branch
        %597 = sbr.rel (%p595) target = $region64
      $region63: #{tpu_custom_call.1} parent=5 // pred_region
        %s598 = ssub.s32 %s18, 2
        // Predicated region
        $region65: #{tpu_custom_call.1} parent=63 // pred_check
          %p599 = pneg %p257
        $region66: #{tpu_custom_call.1} parent=63 // pred_check_branch
          %601 = sbr.rel (%p599) target = $region68
        $region67: #{tpu_custom_call.1} parent=63 // pred_region
          %s602 = sand.u32 %s242, 1
          %s603 = scalar_lea.sflag [#allocation3], %s602
          %s604 = sand.u32 %s242, 1
          %s605 = smul.addr %s604, 8
          %s606 = scalar_lea.vmem [#allocation2], %s605
          %607 = dma.done %s603, 128
        $region68: #{tpu_custom_call.1} parent=63 // pred_fallthru
          _
      $region64: #{tpu_custom_call.1} parent=5 // pred_fallthru
        _
    $region6: #{tpu_custom_call.1} parent=1 // loop_footer
      %s22 = sadd.s32 1, %s18
    $region7: #{tpu_custom_call.1} parent=1 // loop_footer_branch
      %17 = sbr.rel target = $region3
    $region8: #{tpu_custom_call.1} parent=1 // loop_exit
      _
    %608 = vsyncpa [#allocation3], 1
    %s609 = scalar_lea.sflag [#allocation3], 1
    %610 = vsyncpa %s609, 1

</llo_original>
